<compile_context>
chip_gen: v5e
topology: v5e:2x2
jax: 0.10.0
libtpu: 0.0.40
codegen_flags: <defaults>
</compile_context>

<pallas_src>
import functools

import jax
import jax.numpy as jnp
from jax import lax
from jax.experimental import pallas as pl
from jax.experimental.pallas import tpu as pltpu

_VMEM_LIMIT_BYTES = 32 * 1024 * 1024       # safe on v5e/v6e/v7x physical VMEM
_PER_BUFFER_BYTES = 2 * 1024 * 1024        # per input, per pipeline buffer
_ROWS_PATH_MIN_BYTES_PER_BATCH = 128 * 1024  # below this, use the flat path


def _ipow(x, p):
    """x**p using VPU multiplies for small integer p (avoid EUP exp/log)."""
    if isinstance(p, int) and 1 <= p <= 4:
        y = x
        for _ in range(p - 1):
            y = y * x
        return y
    return jnp.power(x, p)


# --------------------------------------------------------------------------
# Fast path: F % 128 == 0 and per-batch work is large.  Dense (rows, 128)
# blocks per batch; reduction over the chunk axis.
# --------------------------------------------------------------------------
def _dice_rows_kernel(p_ref, t_ref, out_ref, num_acc, den_acc, *,
                      smooth, p_pow, total_rows, rows, ragged):
    c = pl.program_id(1)

    @pl.when(c == 0)
    def _():
        num_acc[...] = jnp.zeros_like(num_acc)
        den_acc[...] = jnp.zeros_like(den_acc)

    p = p_ref[...].astype(jnp.float32)           # (rows, 128)
    t = t_ref[...].astype(jnp.float32)
    num_term = p * t
    den_term = _ipow(p, p_pow) + _ipow(t, p_pow)

    if ragged:  # static: only the last chunk has invalid (OOB) rows
        row_ids = c * rows + lax.broadcasted_iota(jnp.int32, (rows, 128), 0)
        valid = row_ids < total_rows
        num_term = jnp.where(valid, num_term, 0.0)
        den_term = jnp.where(valid, den_term, 0.0)

    # Per-lane partial sums (cheap sublane reduce); the cross-lane reduce
    # happens only once, at finalize.
    num_acc[...] += jnp.sum(num_term, axis=0, keepdims=True)
    den_acc[...] += jnp.sum(den_term, axis=0, keepdims=True)

    @pl.when(c == pl.num_programs(1) - 1)
    def _():
        num = jnp.sum(num_acc[...]) + smooth
        den = jnp.sum(den_acc[...]) + smooth
        out_ref[...] = jnp.full((1, 128), 1.0 - num / den, dtype=jnp.float32)


def _dice_rows_path(pf, tf_, smooth, p_pow):
    n, f = pf.shape
    itemsize = max(jnp.dtype(pf.dtype).itemsize, jnp.dtype(tf_.dtype).itemsize)
    total_rows = f // 128
    rows_cap = max(8, (_PER_BUFFER_BYTES // (128 * itemsize)) // 8 * 8)
    if total_rows <= rows_cap:
        rows = total_rows                        # block == full dim (allowed)
    else:
        rows = rows_cap                          # multiple of 8
    num_chunks = (total_rows + rows - 1) // rows
    ragged = (num_chunks * rows) != total_rows

    p3 = pf.reshape(n, total_rows, 128)          # free reshape, no HBM copy
    t3 = tf_.reshape(n, total_rows, 128)

    kernel = functools.partial(
        _dice_rows_kernel, smooth=float(smooth), p_pow=p_pow,
        total_rows=total_rows, rows=rows, ragged=ragged)

    out = pl.pallas_call(
        kernel,
        out_shape=jax.ShapeDtypeStruct((n, 1, 128), jnp.float32),
        grid_spec=pltpu.PrefetchScalarGridSpec(
            num_scalar_prefetch=0,
            grid=(n, num_chunks),
            in_specs=[
                pl.BlockSpec((None, rows, 128), lambda b, c: (b, c, 0)),
                pl.BlockSpec((None, rows, 128), lambda b, c: (b, c, 0)),
            ],
            out_specs=pl.BlockSpec((None, 1, 128), lambda b, c: (b, 0, 0)),
            scratch_shapes=[
                pltpu.VMEM((1, 128), jnp.float32),
                pltpu.VMEM((1, 128), jnp.float32),
            ],
        ),
        compiler_params=pltpu.CompilerParams(
            dimension_semantics=("parallel", "arbitrary"),
            vmem_limit_bytes=_VMEM_LIMIT_BYTES),
    )(p3, t3)
    return out[:, 0, 0]                          # (N,)


# --------------------------------------------------------------------------
# General path: any F (and large-N / small-F shapes).  (N, tile_f) blocks,
# masked ragged last tile, reduction over the feature-tile axis.
# --------------------------------------------------------------------------
def _dice_flat_kernel(p_ref, t_ref, out_ref, num_acc, den_acc, *,
                      smooth, p_pow, f, tile_f, ragged):
    k = pl.program_id(0)

    @pl.when(k == 0)
    def _():
        num_acc[...] = jnp.zeros_like(num_acc)
        den_acc[...] = jnp.zeros_like(den_acc)

    p = p_ref[...].astype(jnp.float32)           # (N, tile_f)
    t = t_ref[...].astype(jnp.float32)
    num_term = p * t
    den_term = _ipow(p, p_pow) + _ipow(t, p_pow)

    if ragged:  # static: only possible on the last tile
        col = k * tile_f + lax.broadcasted_iota(jnp.int32, p.shape, 1)
        valid = col < f
        num_term = jnp.where(valid, num_term, 0.0)
        den_term = jnp.where(valid, den_term, 0.0)

    num_acc[...] += jnp.sum(num_term, axis=1, keepdims=True)
    den_acc[...] += jnp.sum(den_term, axis=1, keepdims=True)

    @pl.when(k == pl.num_programs(0) - 1)
    def _():
        num = num_acc[...] + smooth              # (N, 1)
        den = den_acc[...] + smooth
        out_ref[...] = jnp.broadcast_to(1.0 - num / den, out_ref.shape)


def _dice_flat_path(pf, tf_, smooth, p_pow):
    n, f = pf.shape
    itemsize = max(jnp.dtype(pf.dtype).itemsize, jnp.dtype(tf_.dtype).itemsize)
    padded_n = ((n + 7) // 8) * 8                # VMEM sublane padding
    tile_f = (_PER_BUFFER_BYTES // (padded_n * itemsize)) // 128 * 128
    tile_f = max(128, tile_f)
    tile_f = min(tile_f, ((f + 127) // 128) * 128)
    grid_k = (f + tile_f - 1) // tile_f
    ragged = (grid_k * tile_f) != f
    # TODO(synk): for extremely large N (N*tile_f exceeding VMEM budget) a
    # second (parallel) grid axis over batch tiles would be needed; typical
    # dice-loss batch sizes do not get near that.

    kernel = functools.partial(
        _dice_flat_kernel, smooth=float(smooth), p_pow=p_pow,
        f=f, tile_f=tile_f, ragged=ragged)

    out = pl.pallas_call(
        kernel,
        out_shape=jax.ShapeDtypeStruct((n, 128), jnp.float32),
        grid_spec=pltpu.PrefetchScalarGridSpec(
            num_scalar_prefetch=0,
            grid=(grid_k,),
            in_specs=[
                pl.BlockSpec((n, tile_f), lambda k: (0, k)),
                pl.BlockSpec((n, tile_f), lambda k: (0, k)),
            ],
            out_specs=pl.BlockSpec((n, 128), lambda k: (0, 0)),
            scratch_shapes=[
                pltpu.VMEM((n, 1), jnp.float32),
                pltpu.VMEM((n, 1), jnp.float32),
            ],
        ),
        compiler_params=pltpu.CompilerParams(
            dimension_semantics=("arbitrary",),
            vmem_limit_bytes=_VMEM_LIMIT_BYTES),
    )(pf, tf_)
    return out[:, 0]                              # (N,)


# --------------------------------------------------------------------------
# Public wrapper (matches BinaryDiceLoss.forward semantics).
# --------------------------------------------------------------------------
def binary_dice_loss(predict, target, *, smooth=1.0, p=2, reduction="mean"):
    if reduction not in ("mean", "sum", "none"):
        raise Exception("Unexpected reduction {}".format(reduction))
    assert predict.shape[0] == target.shape[0], \
        "predict & target batch size don't match"

    n = predict.shape[0]
    pf = predict.reshape(n, -1)                  # keep original dtype (bf16 ok)
    tf_ = target.reshape(n, -1)
    f = pf.shape[1]
    itemsize = max(jnp.dtype(pf.dtype).itemsize, jnp.dtype(tf_.dtype).itemsize)

    # Rows path only when per-batch work is big enough that per-batch grid
    # steps still move >= ~256 KiB each; otherwise the flat path processes
    # the whole batch per step (better for small F / large N).
    if f % 128 == 0 and f * itemsize >= _ROWS_PATH_MIN_BYTES_PER_BATCH:
        loss = _dice_rows_path(pf, tf_, smooth, p)
    else:
        loss = _dice_flat_path(pf, tf_, smooth, p)

    if reduction == "mean":
        return loss.mean()
    elif reduction == "sum":
        return loss.sum()
    return loss                                   # (N,)


def _reference(predict, target, smooth=1.0, p=2, reduction="mean"):
    n = predict.shape[0]
    pf = predict.reshape(n, -1).astype(jnp.float32)
    tf_ = target.reshape(n, -1).astype(jnp.float32)
    num = jnp.sum(pf * tf_, axis=1) + smooth
    den = jnp.sum(pf ** p + tf_ ** p, axis=1) + smooth
    loss = 1.0 - num / den
    if reduction == "mean":
        return loss.mean()
    elif reduction == "sum":
        return loss.sum()
    return loss


if __name__ == "__main__":
    key = jax.random.PRNGKey(0)
    k1, k2, k3, k4, k5, k6 = jax.random.split(key, 6)
    ok = True

    def _check(tag, out, ref, rtol=1e-5, atol=1e-5):
        global ok
        if not jnp.allclose(out, ref, rtol=rtol, atol=atol):
            ok = False
            print(f"MISMATCH ({tag}): {out} vs {ref}")

    # Case 1: f32, NCHW with F = 4*16*16 = 1024 (dense flat path, no mask).
    predict = jax.nn.sigmoid(
        jax.random.normal(k1, (2, 4, 16, 16), dtype=jnp.float32))
    target = (jax.random.uniform(k2, (2, 4, 16, 16)) > 0.5).astype(jnp.float32)
    for red in ("mean", "sum", "none"):
        out = jax.block_until_ready(
            binary_dice_loss(predict, target, smooth=1.0, p=2, reduction=red))
        _check(f"f32/{red}", out, _reference(predict, target, 1.0, 2, red))

    # Case 2: bf16 inputs fed directly to the kernel (f32 accumulation inside).
    pb = predict.astype(jnp.bfloat16)
    tb = target.astype(jnp.bfloat16)
    out = jax.block_until_ready(binary_dice_loss(pb, tb, reduction="mean"))
    _check("bf16/mean", out, _reference(pb, tb, 1.0, 2, "mean"))

    # Case 3: F = 5*7*9 = 315 (not a multiple of 128) -> masked flat path,
    # no host-side padding.
    p3 = jax.nn.sigmoid(jax.random.normal(k3, (3, 5, 7, 9), dtype=jnp.float32))
    t3 = (jax.random.uniform(k4, (3, 5, 7, 9)) > 0.5).astype(jnp.float32)
    for red in ("mean", "none"):
        out = jax.block_until_ready(binary_dice_loss(p3, t3, reduction=red))
        _check(f"ragged/{red}", out, _reference(p3, t3, 1.0, 2, red))

    # Case 4: F = 8*64*64 = 32768 -> dense per-batch "rows" path.
    p4 = jax.nn.sigmoid(jax.random.normal(k5, (2, 8, 64, 64), dtype=jnp.float32))
    t4 = (jax.random.uniform(k6, (2, 8, 64, 64)) > 0.5).astype(jnp.float32)
    for red in ("mean", "none"):
        out = jax.block_until_ready(binary_dice_loss(p4, t4, reduction=red))
        _check(f"rows/{red}", out, _reference(p4, t4, 1.0, 2, red))

    if ok:
        print("KERNEL_OK")
</pallas_src>

<mosaic_0001>
module attributes {stable_mosaic.version = 11 : i64} {
  func.func @_dice_flat_kernel(%arg0: i32, %arg1: memref<2x1024xf32, #tpu.memory_space<vmem>>, %arg2: memref<2x1024xf32, #tpu.memory_space<vmem>>, %arg3: memref<2x128xf32, #tpu.memory_space<vmem>>, %arg4: memref<2x1xf32, #tpu.memory_space<vmem>>, %arg5: memref<2x1xf32, #tpu.memory_space<vmem>>) attributes {dimension_semantics = [#tpu.dimension_semantics<arbitrary>], iteration_bounds = array<i64: 1>, scalar_prefetch = 0 : i64, scratch_operands = 2 : i64, tpu.core_type = #tpu.core_type<tc>, window_params = [{transform_indices = @transform_0, window_bounds = array<i64: 2, 1024>}, {transform_indices = @transform_1, window_bounds = array<i64: 2, 1024>}, {pipeline_mode = #tpu.pipeline_mode<synchronous>, transform_indices = @transform_2, window_bounds = array<i64: 2, 128>}]} {
    %c0_i32 = arith.constant 0 : i32
    %0 = arith.cmpi eq, %arg0, %c0_i32 : i32
    %1 = arith.extui %0 : i1 to i32
    %c0_i32_0 = arith.constant 0 : i32
    %2 = arith.cmpi ne, %1, %c0_i32_0 : i32
    scf.if %2 {
      %cst_15 = arith.constant 0.000000e+00 : f32
      %22 = vector.broadcast %cst_15 : f32 to vector<2x1xf32>
      %c0_16 = arith.constant 0 : index
      %c0_17 = arith.constant 0 : index
      %23 = vector.load %arg4[%c0_16, %c0_17] : memref<2x1xf32, #tpu.memory_space<vmem>>, vector<2x1xf32>
      tpu.vector_store %arg4[%c0_16, %c0_17], %22 {strides = array<i32>} : memref<2x1xf32, #tpu.memory_space<vmem>>, vector<2x1xf32>,
      %cst_18 = arith.constant 0.000000e+00 : f32
      %24 = vector.broadcast %cst_18 : f32 to vector<2x1xf32>
      %c0_19 = arith.constant 0 : index
      %c0_20 = arith.constant 0 : index
      %25 = vector.load %arg5[%c0_19, %c0_20] : memref<2x1xf32, #tpu.memory_space<vmem>>, vector<2x1xf32>
      tpu.vector_store %arg5[%c0_19, %c0_20], %24 {strides = array<i32>} : memref<2x1xf32, #tpu.memory_space<vmem>>, vector<2x1xf32>,
    } else {
    }
    %c0 = arith.constant 0 : index
    %c0_1 = arith.constant 0 : index
    %3 = vector.load %arg1[%c0, %c0_1] : memref<2x1024xf32, #tpu.memory_space<vmem>>, vector<2x1024xf32>
    %c0_2 = arith.constant 0 : index
    %c0_3 = arith.constant 0 : index
    %4 = vector.load %arg2[%c0_2, %c0_3] : memref<2x1024xf32, #tpu.memory_space<vmem>>, vector<2x1024xf32>
    %5 = arith.mulf %3, %4 : vector<2x1024xf32>
    %6 = arith.mulf %3, %3 : vector<2x1024xf32>
    %7 = arith.mulf %4, %4 : vector<2x1024xf32>
    %8 = arith.addf %6, %7 : vector<2x1024xf32>
    %c0_4 = arith.constant 0 : index
    %c0_5 = arith.constant 0 : index
    %9 = vector.load %arg4[%c0_4, %c0_5] : memref<2x1xf32, #tpu.memory_space<vmem>>, vector<2x1xf32>
    %cst = arith.constant dense<0.000000e+00> : vector<2xf32>
    %10 = vector.multi_reduction <add>, %5, %cst [1] : vector<2x1024xf32> to vector<2xf32>
    %11 = vector.shape_cast %10 : vector<2xf32> to vector<2x1xf32>
    %12 = arith.addf %9, %11 : vector<2x1xf32>
    %c0_6 = arith.constant 0 : index
    %c0_7 = arith.constant 0 : index
    %13 = vector.load %arg4[%c0_6, %c0_7] : memref<2x1xf32, #tpu.memory_space<vmem>>, vector<2x1xf32>
    tpu.vector_store %arg4[%c0_6, %c0_7], %12 {strides = array<i32>} : memref<2x1xf32, #tpu.memory_space<vmem>>, vector<2x1xf32>,
    %c0_8 = arith.constant 0 : index
    %c0_9 = arith.constant 0 : index
    %14 = vector.load %arg5[%c0_8, %c0_9] : memref<2x1xf32, #tpu.memory_space<vmem>>, vector<2x1xf32>
    %cst_10 = arith.constant dense<0.000000e+00> : vector<2xf32>
    %15 = vector.multi_reduction <add>, %8, %cst_10 [1] : vector<2x1024xf32> to vector<2xf32>
    %16 = vector.shape_cast %15 : vector<2xf32> to vector<2x1xf32>
    %17 = arith.addf %14, %16 : vector<2x1xf32>
    %c0_11 = arith.constant 0 : index
    %c0_12 = arith.constant 0 : index
    %18 = vector.load %arg5[%c0_11, %c0_12] : memref<2x1xf32, #tpu.memory_space<vmem>>, vector<2x1xf32>
    tpu.vector_store %arg5[%c0_11, %c0_12], %17 {strides = array<i32>} : memref<2x1xf32, #tpu.memory_space<vmem>>, vector<2x1xf32>,
    %c0_i32_13 = arith.constant 0 : i32
    %19 = arith.cmpi eq, %arg0, %c0_i32_13 : i32
    %20 = arith.extui %19 : i1 to i32
    %c0_i32_14 = arith.constant 0 : i32
    %21 = arith.cmpi ne, %20, %c0_i32_14 : i32
    scf.if %21 {
      %c0_15 = arith.constant 0 : index
      %c0_16 = arith.constant 0 : index
      %22 = vector.load %arg4[%c0_15, %c0_16] : memref<2x1xf32, #tpu.memory_space<vmem>>, vector<2x1xf32>
      %cst_17 = arith.constant 1.000000e+00 : f32
      %23 = vector.broadcast %cst_17 : f32 to vector<2x1xf32>
      %24 = arith.addf %22, %23 : vector<2x1xf32>
      %c0_18 = arith.constant 0 : index
      %c0_19 = arith.constant 0 : index
      %25 = vector.load %arg5[%c0_18, %c0_19] : memref<2x1xf32, #tpu.memory_space<vmem>>, vector<2x1xf32>
      %cst_20 = arith.constant 1.000000e+00 : f32
      %26 = vector.broadcast %cst_20 : f32 to vector<2x1xf32>
      %27 = arith.addf %25, %26 : vector<2x1xf32>
      %28 = arith.divf %24, %27 : vector<2x1xf32>
      %cst_21 = arith.constant 1.000000e+00 : f32
      %29 = vector.broadcast %cst_21 : f32 to vector<2x1xf32>
      %30 = arith.subf %29, %28 : vector<2x1xf32>
      %31 = vector.shape_cast %30 : vector<2x1xf32> to vector<2x1xf32>
      %32 = vector.broadcast %31 : vector<2x1xf32> to vector<2x128xf32>
      %c0_22 = arith.constant 0 : index
      %c0_23 = arith.constant 0 : index
      %33 = vector.load %arg3[%c0_22, %c0_23] : memref<2x128xf32, #tpu.memory_space<vmem>>, vector<2x128xf32>
      tpu.vector_store %arg3[%c0_22, %c0_23], %32 {strides = array<i32>} : memref<2x128xf32, #tpu.memory_space<vmem>>, vector<2x128xf32>,
    } else {
    }
    return
  }
  func.func @transform_0(%arg0: i32) -> (i32, i32) {
    %c0_i32 = arith.constant 0 : i32
    %c0_i32_0 = arith.constant 0 : i32
    return %c0_i32, %arg0 : i32, i32
  }
  func.func @transform_1(%arg0: i32) -> (i32, i32) {
    %c0_i32 = arith.constant 0 : i32
    %c0_i32_0 = arith.constant 0 : i32
    return %c0_i32, %arg0 : i32, i32
  }
  func.func @transform_2(%arg0: i32) -> (i32, i32) {
    %c0_i32 = arith.constant 0 : i32
    %c0_i32_0 = arith.constant 0 : i32
    %c0_i32_1 = arith.constant 0 : i32
    return %c0_i32, %c0_i32_0 : i32, i32
  }
}

</mosaic_0001>

<llo_original>
// kernel: tpu_custom_call.1
$region0: #{tpu_custom_call.1}
  #allocation0 [shape = 'u32[]', space=smem, size = 0x4, offset = 0x4, fixed_abs, tag = 'smem constant byte address 0x4 - core index']
  #allocation1 [shape = 'u32[72,128]{1,0:T(1,128)}', space=vmem, size = 0x9000, scoped, tag = 'internal scratch']
  #allocation2 [shape = 'f32[2,1]{1,0:T(2,128)}', space=vmem, size = 0x400, scoped, tag = 'scratch operand']
  #allocation3 [shape = 'f32[2,1]{1,0:T(2,128)}', space=vmem, size = 0x400, scoped, tag = 'scratch operand']
  %s0 = inlined_call_operand.hbm [shape: f32[2,1024], index: 0, kind: input, shape index: {}]
  %s1 = inlined_call_operand.hbm [shape: f32[2,1024], index: 1, kind: input, shape index: {}]
  %s2 = inlined_call_operand.hbm [shape: f32[2,128], index: 2, kind: output, shape index: {}]
  %s3 = sld [smem:[#allocation0]]
  $region34: #{tpu_custom_call.1} parent=0
    _
  %s5 = ssub.s32 1, %s3
  %s6 = scalar_select 0, %s5, %s3
  $region1: #{tpu_custom_call.1} parent=0
    #allocation4 [shape = 'u8[8192]{0}', space=vmem, size = 0x2000, scoped, tag = 'input window, operand 0, single buffered']
    #allocation5 [shape = 's32[1]{0}', space=sflag, size = 0x4, scoped, tag = 'scoped memory for tpu_custom_call.1']
    #allocation6 [shape = 's32[1]{0}', space=sflag, size = 0x4, scoped, tag = 'scoped memory for tpu_custom_call.1']
    #allocation7 [shape = 'u8[8192]{0}', space=vmem, size = 0x2000, scoped, tag = 'input window, operand 1, single buffered']
    #allocation8 [shape = 's32[1]{0}', space=sflag, size = 0x4, scoped, tag = 'scoped memory for tpu_custom_call.1']
    #allocation9 [shape = 'u8[1024]{0}', space=vmem, size = 0x400, scoped, tag = 'output window, operand 0, single buffered']
    %7 = vsyncpa [#allocation5], 0
    %8 = vsyncpa [#allocation8], 0
    %9 = vsyncpa [#allocation6], 0
    // Predicated region
    $region2: #{tpu_custom_call.1} parent=1 // pred_check
      _
    $region3: #{tpu_custom_call.1} parent=1 // pred_check_branch
      %11 = sbr.rel (0) target = $region5
    $region4: #{tpu_custom_call.1} parent=1 // pred_region
      %13 = vsyncadd [#allocation5], 0
      %s15 = sshll.u32 %s0, 4
      %s16 = int_to_ptr.hbm [resolvable:$true] %s15
      %s17 = sshll.u32 [#allocation4], 4
      %s18 = int_to_ptr.vmem [resolvable:$true] %s17
      %20 = dma.hbm_to_vmem [thread:$0]  %s16, 256, %s18, [#allocation5]
    $region5: #{tpu_custom_call.1} parent=1 // pred_fallthru
      _
    // Predicated region
    $region6: #{tpu_custom_call.1} parent=1 // pred_check
      _
    $region7: #{tpu_custom_call.1} parent=1 // pred_check_branch
      %22 = sbr.rel (0) target = $region9
    $region8: #{tpu_custom_call.1} parent=1 // pred_region
      %24 = vsyncadd [#allocation8], 0
      %s26 = sshll.u32 %s1, 4
      %s27 = int_to_ptr.hbm [resolvable:$true] %s26
      %s28 = sshll.u32 [#allocation7], 4
      %s29 = int_to_ptr.vmem [resolvable:$true] %s28
      %31 = dma.hbm_to_vmem [thread:$0]  %s27, 256, %s29, [#allocation8]
    $region9: #{tpu_custom_call.1} parent=1 // pred_fallthru
      _
    // Predicated region
    $region10: #{tpu_custom_call.1} parent=1 // pred_check
      _
    $region11: #{tpu_custom_call.1} parent=1 // pred_check_branch
      %33 = sbr.rel (0) target = $region13
    $region12: #{tpu_custom_call.1} parent=1 // pred_region
      %35 = dma.done [#allocation5], 256
    $region13: #{tpu_custom_call.1} parent=1 // pred_fallthru
      _
    // Predicated region
    $region14: #{tpu_custom_call.1} parent=1 // pred_check
      _
    $region15: #{tpu_custom_call.1} parent=1 // pred_check_branch
      %37 = sbr.rel (0) target = $region17
    $region16: #{tpu_custom_call.1} parent=1 // pred_region
      %39 = dma.done [#allocation8], 256
    $region17: #{tpu_custom_call.1} parent=1 // pred_fallthru
      _
    %p40 = scmp.eq.s32.totalorder 0, 0
    // Predicated region
    $region18: #{tpu_custom_call.1} parent=1 // pred_check
      %p41 = pneg %p40
    $region19: #{tpu_custom_call.1} parent=1 // pred_check_branch
      %43 = sbr.rel (%p41) target = $region21
    $region20: #{tpu_custom_call.1} parent=1 // pred_region
      %vm44 = vcmask 1024
      %45 = vst.msk [vmem:[#allocation2] sm:$0x3] %vm44, 0.0
      %46 = vst.msk [vmem:[#allocation3] sm:$0x3] %vm44, 0.0
    $region21: #{tpu_custom_call.1} parent=1 // pred_fallthru
      _
    %v47 = vld [vmem:[#allocation4] sm:$0xff]
    %v48 = vld [vmem:[#allocation4 + $0x8] sm:$0xff]
    %v49 = vld [vmem:[#allocation7] sm:$0xff]
    %v50 = vld [vmem:[#allocation7 + $0x8] sm:$0xff]
    %v51 = vmul.f32 %v47, %v49
    %v52 = vmul.f32 %v48, %v50
    %v53 = vmul.f32 %v47, %v47
    %v54 = vmul.f32 %v48, %v48
    %v55 = vmul.f32 %v49, %v49
    %v56 = vmul.f32 %v50, %v50
    %v57 = vadd.f32 %v53, %v55
    %v58 = vadd.f32 %v54, %v56
    %v59 = vld [vmem:[#allocation2] sm:$0x3]
    %62 = vst [vmem:[#allocation1] ss:$4 sm:$0xff] %v51
    %s63 = scalar_lea.vmem [#allocation1], 32
    %64 = vst [vmem:[%s63] ss:$4 sm:$0xff] %v52
    %v65 = vld.sshfl [vmem:[#allocation1] sm:$0xff pattern:$0x73625140]
    %v66 = vld.sshfl [vmem:[#allocation1 + $0x8] sm:$0xff pattern:$0x73625140]
    %v67 = vld.sshfl [vmem:[#allocation1 + $0x10] sm:$0xff pattern:$0x73625140]
    %v68 = vld.sshfl [vmem:[#allocation1 + $0x18] sm:$0xff pattern:$0x73625140]
    %v69 = vld.sshfl [vmem:[#allocation1 + $0x20] sm:$0xff pattern:$0x73625140]
    %v70 = vld.sshfl [vmem:[#allocation1 + $0x28] sm:$0xff pattern:$0x73625140]
    %v71 = vld.sshfl [vmem:[#allocation1 + $0x30] sm:$0xff pattern:$0x73625140]
    %v72 = vld.sshfl [vmem:[#allocation1 + $0x38] sm:$0xff pattern:$0x73625140]
    %vm81 = vcmask 1041408
    %v82 = vsel %vm81, %v65, 0.0
    %v83 = vsel %vm81, %v66, 0.0
    %v84 = vadd.f32 %v82, %v83
    %v85 = vsel %vm81, %v67, 0.0
    %v86 = vadd.f32 %v84, %v85
    %v87 = vsel %vm81, %v68, 0.0
    %v88 = vadd.f32 %v86, %v87
    %v89 = vsel %vm81, %v69, 0.0
    %v90 = vadd.f32 %v88, %v89
    %v91 = vsel %vm81, %v70, 0.0
    %v92 = vadd.f32 %v90, %v91
    %v93 = vsel %vm81, %v71, 0.0
    %v94 = vadd.f32 %v92, %v93
    %v95 = vsel %vm81, %v72, 0.0
    %v96 = vadd.f32 %v94, %v95
    %97 = vadd.xlane.f32.xlu0 %v96
    %v98 = vpop.xlane.xlu0 %97
    %v99 = vadd.f32 %v59, %v98
    %vm100 = vcmask 1024
    %101 = vst.msk [vmem:[#allocation2] sm:$0x3] %vm100, %v99
    %v102 = vld [vmem:[#allocation3] sm:$0x3]
    %105 = vst [vmem:[#allocation1] ss:$4 sm:$0xff] %v57
    %s106 = scalar_lea.vmem [#allocation1], 32
    %107 = vst [vmem:[%s106] ss:$4 sm:$0xff] %v58
    %v108 = vld.sshfl [vmem:[#allocation1] sm:$0xff pattern:$0x73625140]
    %v109 = vld.sshfl [vmem:[#allocation1 + $0x8] sm:$0xff pattern:$0x73625140]
    %v110 = vld.sshfl [vmem:[#allocation1 + $0x10] sm:$0xff pattern:$0x73625140]
    %v111 = vld.sshfl [vmem:[#allocation1 + $0x18] sm:$0xff pattern:$0x73625140]
    %v112 = vld.sshfl [vmem:[#allocation1 + $0x20] sm:$0xff pattern:$0x73625140]
    %v113 = vld.sshfl [vmem:[#allocation1 + $0x28] sm:$0xff pattern:$0x73625140]
    %v114 = vld.sshfl [vmem:[#allocation1 + $0x30] sm:$0xff pattern:$0x73625140]
    %v115 = vld.sshfl [vmem:[#allocation1 + $0x38] sm:$0xff pattern:$0x73625140]
    %v124 = vsel %vm81, %v108, 0.0
    %v125 = vsel %vm81, %v109, 0.0
    %v126 = vadd.f32 %v124, %v125
    %v127 = vsel %vm81, %v110, 0.0
    %v128 = vadd.f32 %v126, %v127
    %v129 = vsel %vm81, %v111, 0.0
    %v130 = vadd.f32 %v128, %v129
    %v131 = vsel %vm81, %v112, 0.0
    %v132 = vadd.f32 %v130, %v131
    %v133 = vsel %vm81, %v113, 0.0
    %v134 = vadd.f32 %v132, %v133
    %v135 = vsel %vm81, %v114, 0.0
    %v136 = vadd.f32 %v134, %v135
    %v137 = vsel %vm81, %v115, 0.0
    %v138 = vadd.f32 %v136, %v137
    %139 = vadd.xlane.f32.xlu0 %v138
    %v140 = vpop.xlane.xlu0 %139
    %v141 = vadd.f32 %v102, %v140
    %142 = vst.msk [vmem:[#allocation3] sm:$0x3] %vm100, %v141
    // Predicated region
    $region22: #{tpu_custom_call.1} parent=1 // pred_check
      %p143 = pneg %p40
    $region23: #{tpu_custom_call.1} parent=1 // pred_check_branch
      %145 = sbr.rel (%p143) target = $region25
    $region24: #{tpu_custom_call.1} parent=1 // pred_region
      %v146 = vld [vmem:[#allocation2] sm:$0x3]
      %v147 = vadd.f32 %v146, 1.0
      %v148 = vld [vmem:[#allocation3] sm:$0x3]
      %v149 = vadd.f32 %v148, 1.0
      %v150 = vrcp.pop %v149
      %v151 = vmul.f32 %v149, %v150
      %v152 = vsub.f32 1.0, %v151
      %v153 = vmul.f32 %v150, %v152
      %v154 = vadd.f32 %v150, %v153
      %vm155 = vweird.f32 %v149
      %vm156 = vweird.f32 %v150
      %vm157 = vmor %vm155, %vm156
      %v158 = vsel %vm157, %v150, %v154
      %v159 = vand.u32 2147483647, %v149
      %vm160 = vcmp.eq.f32.partialorder %v159, 8.507059e+37
      %v161 = vand.u32 %v149, 2147483648
      %v162 = vor.u32 1.1754944e-38, %v161
      %v163 = vsel %vm160, %v162, %v158
      %v164 = vmul.f32 %v147, %v163
      %v165 = vsub.f32 1.0, %v164
      %167 = vset.pattern.permute.xlu0 0
      %168 = vperm.xlu0 %167, %v165
      %v169 = vpop.permute.xlu0 %168
      %171 = vst [vmem:[#allocation9] sm:$0x3] %v169
    $region25: #{tpu_custom_call.1} parent=1 // pred_fallthru
      _
    // Predicated region
    $region26: #{tpu_custom_call.1} parent=1 // pred_check
      _
    $region27: #{tpu_custom_call.1} parent=1 // pred_check_branch
      %173 = sbr.rel (0) target = $region29
    $region28: #{tpu_custom_call.1} parent=1 // pred_region
      %175 = vsyncadd [#allocation6], 0
      %s177 = sshll.u32 [#allocation9], 4
      %s178 = int_to_ptr.vmem [resolvable:$true] %s177
      %s179 = sshll.u32 %s2, 4
      %s180 = int_to_ptr.hbm [resolvable:$true] %s179
      %182 = dma.vmem_to_hbm [thread:$0]  %s178, 32, %s180, [#allocation6]
    $region29: #{tpu_custom_call.1} parent=1 // pred_fallthru
      _
    // Predicated region
    $region30: #{tpu_custom_call.1} parent=1 // pred_check
      _
    $region31: #{tpu_custom_call.1} parent=1 // pred_check_branch
      %184 = sbr.rel (0) target = $region33
    $region32: #{tpu_custom_call.1} parent=1 // pred_region
      %186 = dma.done [#allocation6], 32
    $region33: #{tpu_custom_call.1} parent=1 // pred_fallthru
      _
    %187 = vsyncpa [#allocation5], 1
    %188 = vsyncpa [#allocation8], 1
    %189 = vsyncpa [#allocation6], 1

</llo_original>
